<compile_context>
chip_gen: v7x
topology: tpu7x:2x2x1
jax: 0.10.0
libtpu: 0.0.40
codegen_flags: <defaults>
</compile_context>

<pallas_src>
import jax
import jax.numpy as jnp
from jax.experimental import pallas as pl
from jax.experimental.pallas import tpu as pltpu

HIDDEN = 512
LANE = 128
BF16_SUBLANE = 16   # native bf16 tile is (16, 128)


def _round_up(x, m):
    return ((x + m - 1) // m) * m


def _device_kind():
    try:
        return jax.devices()[0].device_kind.lower()
    except Exception:
        return ""


def dqn_kernel(x_ref, w1_ref, b1_ref, w2_ref, b2_ref, w3_ref, b3_ref, out_ref):
    # x arrives as f32 straight from the caller; cast to bf16 in VMEM (no host-side copy).
    x = x_ref[...].astype(w1_ref.dtype)
    # layer 1: ReLU(x @ W1 + b1)  (bf16 MXU operands, f32 accumulate)
    h1 = jnp.dot(x, w1_ref[...], preferred_element_type=jnp.float32)
    # epilogue in b1's dtype: bf16 on v6e/v7x (2x VALU), f32 on v5e.
    h1 = jnp.maximum(h1.astype(b1_ref.dtype) + b1_ref[...], 0)
    # layer 2: ReLU(h1 @ W2 + b2)
    h2 = jnp.dot(h1.astype(w2_ref.dtype), w2_ref[...],
                 preferred_element_type=jnp.float32)
    h2 = jnp.maximum(h2.astype(b2_ref.dtype) + b2_ref[...], 0)
    # layer 3 (no activation): h2 @ W3 + b3  (output features lane-padded to 128)
    out = jnp.dot(h2.astype(w3_ref.dtype), w3_ref[...],
                  preferred_element_type=jnp.float32)
    out_ref[...] = (out + b3_ref[...]).astype(out_ref.dtype)


def _choose_batch_tile(batch):
    kind = _device_kind()
    # Large tiles amortize the ~0.35 us per-grid-step overhead; VMEM is ample everywhere.
    preferred = 512 if "v5" in kind else 1024
    # Small batches: one tile covering the whole batch, aligned to the bf16 (16,128) tile.
    tb = min(preferred, _round_up(batch, BF16_SUBLANE))
    if "v7" in kind and batch >= 2 * LANE:
        # Keep >= 2 batch tiles so the "parallel" grid axis shards across both v7x TCs.
        tb = min(tb, max(LANE, _round_up(pl.cdiv(batch, 2), LANE)))
    return tb


def prepare_params(params, *, param_dtype=jnp.bfloat16, epilogue_dtype=None):
    """One-time cast/pad of the f32 params into kernel-ready form.

    Call once (e.g. after each optimizer step) and reuse the result across forward calls,
    so no per-forward HBM pass over the weights is needed.
    """
    if epilogue_dtype is None:
        # bf16 bias-add/ReLU epilogue on v6e/v7x; v5e has no bf16 VALU -> f32 epilogue.
        epilogue_dtype = jnp.float32 if "v5" in _device_kind() else jnp.bfloat16
    w1, b1, w2, b2, w3, b3 = params
    n_out = w3.shape[1]
    n_out_pad = _round_up(n_out, LANE)   # lane-dense output stores

    w1_c = w1.astype(param_dtype)
    w2_c = w2.astype(param_dtype)
    w3_p = jnp.zeros((w3.shape[0], n_out_pad), param_dtype).at[:, :n_out].set(
        w3.astype(param_dtype))
    b1_c = b1.reshape(1, -1).astype(epilogue_dtype)
    b2_c = b2.reshape(1, -1).astype(epilogue_dtype)
    b3_p = jnp.zeros((1, n_out_pad), jnp.float32).at[:, :n_out].set(
        b3.reshape(1, -1).astype(jnp.float32))
    return (w1_c, b1_c, w2_c, b2_c, w3_p, b3_p, n_out)


def dqn_forward(x, prepared, *, block_batch=None):
    """Fused 3-layer MLP forward.

    x: (batch, n_inputs) f32.  prepared: output of prepare_params().
    Returns (batch, n_outputs) f32.
    """
    w1, b1, w2, b2, w3_p, b3_p, n_out = prepared
    batch, n_in = x.shape
    n_out_pad = w3_p.shape[1]

    tb = _choose_batch_tile(batch) if block_batch is None else _round_up(block_batch, 8)
    padded_batch = _round_up(batch, tb)
    # Only row-padding (to a tile multiple), only when needed; features stay unpadded f32.
    x_in = x if padded_batch == batch else jnp.pad(x, ((0, padded_batch - batch), (0, 0)))

    grid = (padded_batch // tb,)

    # Weights / biases: constant index_map -> DMA'd once, stay VMEM-resident across tiles.
    # (Double-buffering them is harmless at ~0.8 MiB; footprint stays far under VMEM.)
    resident = lambda shape: pl.BlockSpec(shape, lambda i: (0, 0))

    out_p = pl.pallas_call(
        dqn_kernel,
        out_shape=jax.ShapeDtypeStruct((padded_batch, n_out_pad), jnp.float32),
        grid=grid,
        in_specs=[
            pl.BlockSpec((tb, n_in), lambda i: (i, 0)),  # x: tiled along batch, f32
            resident(w1.shape), resident(b1.shape),
            resident(w2.shape), resident(b2.shape),
            resident(w3_p.shape), resident(b3_p.shape),
        ],
        out_specs=pl.BlockSpec((tb, n_out_pad), lambda i: (i, 0)),
        compiler_params=pltpu.CompilerParams(
            dimension_semantics=("parallel",)),  # megacore-shards the batch axis on v7x
    )(x_in, w1, b1, w2, b2, w3_p, b3_p)

    return out_p[:batch, :n_out]


def init_params(key, n_inputs, n_outputs):
    """Deterministic init mirroring PyTorch Linear's uniform(-1/sqrt(fan_in), +1/sqrt(fan_in)).
    Weights stored as (in_features, out_features); biases as (1, out_features)."""
    ks = jax.random.split(key, 6)

    def lin(kw, kb, fan_in, fan_out):
        bound = 1.0 / jnp.sqrt(fan_in)
        w = jax.random.uniform(kw, (fan_in, fan_out), jnp.float32, -bound, bound)
        b = jax.random.uniform(kb, (1, fan_out), jnp.float32, -bound, bound)
        return w, b

    w1, b1 = lin(ks[0], ks[1], n_inputs, HIDDEN)
    w2, b2 = lin(ks[2], ks[3], HIDDEN, HIDDEN)
    w3, b3 = lin(ks[4], ks[5], HIDDEN, n_outputs)
    return (w1, b1, w2, b2, w3, b3)


def _ref_forward(x, prepared):
    """Pure-JAX reference with exactly the kernel's dtype flow (bf16 MXU operands,
    f32 accumulation, device-dependent epilogue dtype)."""
    w1, b1, w2, b2, w3_p, b3_p, n_out = prepared
    h = jnp.dot(x.astype(w1.dtype), w1, preferred_element_type=jnp.float32)
    h = jnp.maximum(h.astype(b1.dtype) + b1, 0)
    h = jnp.dot(h.astype(w2.dtype), w2, preferred_element_type=jnp.float32)
    h = jnp.maximum(h.astype(b2.dtype) + b2, 0)
    out = jnp.dot(h.astype(w3_p.dtype), w3_p, preferred_element_type=jnp.float32) + b3_p
    return out[:, :n_out]


# TODO(synk): Adam optimizer / MSELoss training step from the PyTorch module are host-side
# training state, not part of the forward pass, and are not implemented here.

if __name__ == "__main__":
    key = jax.random.PRNGKey(0)
    k_x, k_p, k_x2 = jax.random.split(key, 3)

    batch, n_inputs, n_outputs = 8, 16, 4
    x = jax.random.normal(k_x, (batch, n_inputs), jnp.float32)
    params = init_params(k_p, n_inputs, n_outputs)
    prepared = prepare_params(params)   # one-time cast/pad; reused across forwards

    # Small-batch path (single grid step).
    actions = dqn_forward(x, prepared)
    jax.block_until_ready(actions)
    ref = _ref_forward(x, prepared)
    assert actions.shape == (batch, n_outputs)
    assert jnp.allclose(actions, ref, atol=2e-2, rtol=2e-2)

    # Multi-tile path (row padding + grid > 1), forcing a small batch tile.
    batch2 = 40
    x2 = jax.random.normal(k_x2, (batch2, n_inputs), jnp.float32)
    actions2 = dqn_forward(x2, prepared, block_batch=16)
    jax.block_until_ready(actions2)
    ref2 = _ref_forward(x2, prepared)
    assert actions2.shape == (batch2, n_outputs)
    assert jnp.allclose(actions2, ref2, atol=2e-2, rtol=2e-2)

    print("KERNEL_OK")
</pallas_src>

<mosaic_0001>
module attributes {stable_mosaic.version = 11 : i64} {
  func.func @dqn_kernel(%arg0: i32, %arg1: memref<16x16xf32, #tpu.memory_space<vmem>>, %arg2: memref<16x512xbf16, #tpu.memory_space<vmem>>, %arg3: memref<1x512xbf16, #tpu.memory_space<vmem>>, %arg4: memref<512x512xbf16, #tpu.memory_space<vmem>>, %arg5: memref<1x512xbf16, #tpu.memory_space<vmem>>, %arg6: memref<512x128xbf16, #tpu.memory_space<vmem>>, %arg7: memref<1x128xf32, #tpu.memory_space<vmem>>, %arg8: memref<16x128xf32, #tpu.memory_space<vmem>>) attributes {dimension_semantics = [#tpu.dimension_semantics<parallel>], iteration_bounds = array<i64: 1>, scalar_prefetch = 0 : i64, scratch_operands = 0 : i64, tpu.core_type = #tpu.core_type<tc>, window_params = [{transform_indices = @transform_0, window_bounds = array<i64: 16, 16>}, {pipeline_mode = #tpu.pipeline_mode<synchronous>, transform_indices = @transform_1, window_bounds = array<i64: 16, 512>}, {pipeline_mode = #tpu.pipeline_mode<synchronous>, transform_indices = @transform_2, window_bounds = array<i64: 1, 512>}, {pipeline_mode = #tpu.pipeline_mode<synchronous>, transform_indices = @transform_3, window_bounds = array<i64: 512, 512>}, {pipeline_mode = #tpu.pipeline_mode<synchronous>, transform_indices = @transform_4, window_bounds = array<i64: 1, 512>}, {pipeline_mode = #tpu.pipeline_mode<synchronous>, transform_indices = @transform_5, window_bounds = array<i64: 512, 128>}, {pipeline_mode = #tpu.pipeline_mode<synchronous>, transform_indices = @transform_6, window_bounds = array<i64: 1, 128>}, {transform_indices = @transform_7, window_bounds = array<i64: 16, 128>}]} {
    %c0 = arith.constant 0 : index
    %c0_0 = arith.constant 0 : index
    %0 = vector.load %arg1[%c0, %c0_0] : memref<16x16xf32, #tpu.memory_space<vmem>>, vector<16x16xf32>
    %1 = arith.truncf %0 : vector<16x16xf32> to vector<16x16xbf16>
    %c0_1 = arith.constant 0 : index
    %c0_2 = arith.constant 0 : index
    %2 = vector.load %arg2[%c0_1, %c0_2] : memref<16x512xbf16, #tpu.memory_space<vmem>>, vector<16x512xbf16>
    %cst = arith.constant dense<0.000000e+00> : vector<16x512xf32>
    %3 = tpu.matmul %1, %2, %cst {dimension_numbers = #tpu.dot_dimension_numbers<[1], [0], [0], [1], [0, 0, 1, 1], [], []>} : vector<16x16xbf16>, vector<16x512xbf16>, vector<16x512xf32> -> vector<16x512xf32>
    %4 = arith.truncf %3 : vector<16x512xf32> to vector<16x512xbf16>
    %c0_3 = arith.constant 0 : index
    %c0_4 = arith.constant 0 : index
    %5 = vector.load %arg3[%c0_3, %c0_4] : memref<1x512xbf16, #tpu.memory_space<vmem>>, vector<1x512xbf16>
    %6 = vector.broadcast %5 : vector<1x512xbf16> to vector<16x512xbf16>
    %7 = arith.addf %4, %6 : vector<16x512xbf16>
    %cst_5 = arith.constant 0.000000e+00 : bf16
    %8 = vector.broadcast %cst_5 : bf16 to vector<16x512xbf16>
    %9 = arith.maximumf %7, %8 : vector<16x512xbf16>
    %c0_6 = arith.constant 0 : index
    %c0_7 = arith.constant 0 : index
    %10 = vector.load %arg4[%c0_6, %c0_7] : memref<512x512xbf16, #tpu.memory_space<vmem>>, vector<512x512xbf16>
    %cst_8 = arith.constant dense<0.000000e+00> : vector<16x512xf32>
    %11 = tpu.matmul %9, %10, %cst_8 {dimension_numbers = #tpu.dot_dimension_numbers<[1], [0], [0], [1], [0, 0, 1, 1], [], []>} : vector<16x512xbf16>, vector<512x512xbf16>, vector<16x512xf32> -> vector<16x512xf32>
    %12 = arith.truncf %11 : vector<16x512xf32> to vector<16x512xbf16>
    %c0_9 = arith.constant 0 : index
    %c0_10 = arith.constant 0 : index
    %13 = vector.load %arg5[%c0_9, %c0_10] : memref<1x512xbf16, #tpu.memory_space<vmem>>, vector<1x512xbf16>
    %14 = vector.broadcast %13 : vector<1x512xbf16> to vector<16x512xbf16>
    %15 = arith.addf %12, %14 : vector<16x512xbf16>
    %cst_11 = arith.constant 0.000000e+00 : bf16
    %16 = vector.broadcast %cst_11 : bf16 to vector<16x512xbf16>
    %17 = arith.maximumf %15, %16 : vector<16x512xbf16>
    %c0_12 = arith.constant 0 : index
    %c0_13 = arith.constant 0 : index
    %18 = vector.load %arg6[%c0_12, %c0_13] : memref<512x128xbf16, #tpu.memory_space<vmem>>, vector<512x128xbf16>
    %cst_14 = arith.constant dense<0.000000e+00> : vector<16x128xf32>
    %19 = tpu.matmul %17, %18, %cst_14 {dimension_numbers = #tpu.dot_dimension_numbers<[1], [0], [0], [1], [0, 0, 1, 1], [], []>} : vector<16x512xbf16>, vector<512x128xbf16>, vector<16x128xf32> -> vector<16x128xf32>
    %c0_15 = arith.constant 0 : index
    %c0_16 = arith.constant 0 : index
    %20 = vector.load %arg7[%c0_15, %c0_16] : memref<1x128xf32, #tpu.memory_space<vmem>>, vector<1x128xf32>
    %21 = vector.broadcast %20 : vector<1x128xf32> to vector<16x128xf32>
    %22 = arith.addf %19, %21 : vector<16x128xf32>
    %c0_17 = arith.constant 0 : index
    %c0_18 = arith.constant 0 : index
    %23 = vector.load %arg8[%c0_17, %c0_18] : memref<16x128xf32, #tpu.memory_space<vmem>>, vector<16x128xf32>
    tpu.vector_store %arg8[%c0_17, %c0_18], %22 {strides = array<i32>} : memref<16x128xf32, #tpu.memory_space<vmem>>, vector<16x128xf32>,
    return
  }
  func.func @transform_0(%arg0: i32) -> (i32, i32) {
    %c0_i32 = arith.constant 0 : i32
    %c0_i32_0 = arith.constant 0 : i32
    return %arg0, %c0_i32 : i32, i32
  }
  func.func @transform_1(%arg0: i32) -> (i32, i32) {
    %c0_i32 = arith.constant 0 : i32
    %c0_i32_0 = arith.constant 0 : i32
    %c0_i32_1 = arith.constant 0 : i32
    return %c0_i32, %c0_i32_0 : i32, i32
  }
  func.func @transform_2(%arg0: i32) -> (i32, i32) {
    %c0_i32 = arith.constant 0 : i32
    %c0_i32_0 = arith.constant 0 : i32
    %c0_i32_1 = arith.constant 0 : i32
    return %c0_i32, %c0_i32_0 : i32, i32
  }
  func.func @transform_3(%arg0: i32) -> (i32, i32) {
    %c0_i32 = arith.constant 0 : i32
    %c0_i32_0 = arith.constant 0 : i32
    %c0_i32_1 = arith.constant 0 : i32
    return %c0_i32, %c0_i32_0 : i32, i32
  }
  func.func @transform_4(%arg0: i32) -> (i32, i32) {
    %c0_i32 = arith.constant 0 : i32
    %c0_i32_0 = arith.constant 0 : i32
    %c0_i32_1 = arith.constant 0 : i32
    return %c0_i32, %c0_i32_0 : i32, i32
  }
  func.func @transform_5(%arg0: i32) -> (i32, i32) {
    %c0_i32 = arith.constant 0 : i32
    %c0_i32_0 = arith.constant 0 : i32
    %c0_i32_1 = arith.constant 0 : i32
    return %c0_i32, %c0_i32_0 : i32, i32
  }
  func.func @transform_6(%arg0: i32) -> (i32, i32) {
    %c0_i32 = arith.constant 0 : i32
    %c0_i32_0 = arith.constant 0 : i32
    %c0_i32_1 = arith.constant 0 : i32
    return %c0_i32, %c0_i32_0 : i32, i32
  }
  func.func @transform_7(%arg0: i32) -> (i32, i32) {
    %c0_i32 = arith.constant 0 : i32
    %c0_i32_0 = arith.constant 0 : i32
    return %arg0, %c0_i32 : i32, i32
  }
}

</mosaic_0001>

<llo_original>
// kernel: tpu_custom_call.1
$region0: #{tpu_custom_call.1}
  #allocation0 [shape = 'u32[]', space=smem, size = 0x4, offset = 0x4, fixed_abs, tag = 'smem constant byte address 0x4 - core index']
  #allocation1 [shape = 'u32[144,128]{1,0:T(1,128)}', space=vmem, size = 0x12000, scoped, tag = 'internal scratch']
  %s0 = inlined_call_operand.hbm [shape: f32[16,16], index: 0, kind: input, shape index: {}]
  %s1 = inlined_call_operand.hbm [shape: bf16[16,512], index: 1, kind: input, shape index: {}]
  %s2 = inlined_call_operand.vmem [shape: bf16[1,512], index: 2, kind: input, shape index: {}]
  %s3 = inlined_call_operand.hbm [shape: bf16[512,512], index: 3, kind: input, shape index: {}]
  %s4 = inlined_call_operand.vmem [shape: bf16[1,512], index: 4, kind: input, shape index: {}]
  %s5 = inlined_call_operand.hbm [shape: bf16[512,128], index: 5, kind: input, shape index: {}]
  %s6 = inlined_call_operand.vmem [shape: f32[1,128], index: 6, kind: input, shape index: {}]
  %s7 = inlined_call_operand.hbm [shape: f32[16,128], index: 7, kind: output, shape index: {}]
  %s8 = sld [smem:[#allocation0]]
  $region54: #{tpu_custom_call.1} parent=0
    _
  %s10 = ssub.s32 1, %s8
  %s11 = scalar_select 0, %s10, %s8
  $region1: #{tpu_custom_call.1} parent=0
    #allocation2 [shape = 'u8[8192]{0}', space=vmem, size = 0x2000, scoped, tag = 'input window, operand 0, single buffered']
    #allocation3 [shape = 's32[1]{0}', space=sflag, size = 0x4, scoped, tag = 'scoped memory for tpu_custom_call.1']
    #allocation4 [shape = 's32[1]{0}', space=sflag, size = 0x4, scoped, tag = 'scoped memory for tpu_custom_call.1']
    #allocation5 [shape = 'u8[16384]{0}', space=vmem, size = 0x4000, scoped, tag = 'input window, operand 1, single buffered']
    #allocation6 [shape = 's32[1]{0}', space=sflag, size = 0x4, scoped, tag = 'scoped memory for tpu_custom_call.1']
    #allocation7 [shape = 'u8[524288]{0}', space=vmem, size = 0x80000, scoped, tag = 'input window, operand 3, single buffered']
    #allocation8 [shape = 'u8[131072]{0}', space=vmem, size = 0x20000, scoped, tag = 'input window, operand 5, single buffered']
    #allocation9 [shape = 's32[1]{0}', space=sflag, size = 0x4, scoped, tag = 'scoped memory for tpu_custom_call.1']
    #allocation10 [shape = 'u8[8192]{0}', space=vmem, size = 0x2000, scoped, tag = 'output window, operand 0, single buffered']
    %12 = vsyncpa [#allocation3], 0
    %13 = vsyncpa [#allocation6], 0
    %14 = vsyncpa [#allocation9], 0
    %15 = vsyncpa [#allocation4], 0
    // Predicated region
    $region2: #{tpu_custom_call.1} parent=1 // pred_check
      _
    $region3: #{tpu_custom_call.1} parent=1 // pred_check_branch
      %17 = sbr.rel (0) target = $region5
    $region4: #{tpu_custom_call.1} parent=1 // pred_region
      %s19 = ssub.s32 256, 256
      %20 = vsyncadd [#allocation3], %s19
      %s21 = sshll.u32 [#allocation2], 4
      %s22 = int_to_ptr.vmem [resolvable:$true] %s21
      %27 = dma.hbm_to_vmem [thread:$0]  %s0, 256, %s22, [#allocation3], 128, 128, 8
    $region5: #{tpu_custom_call.1} parent=1 // pred_fallthru
      _
    // Predicated region
    $region6: #{tpu_custom_call.1} parent=1 // pred_check
      _
    $region7: #{tpu_custom_call.1} parent=1 // pred_check_branch
      %29 = sbr.rel (0) target = $region9
    $region8: #{tpu_custom_call.1} parent=1 // pred_region
      %s31 = ssub.s32 512, 512
      %32 = vsyncadd [#allocation6], %s31
      %s33 = sshll.u32 [#allocation5], 4
      %s34 = int_to_ptr.vmem [resolvable:$true] %s33
      %39 = dma.hbm_to_vmem [thread:$0]  %s1, 512, %s34, [#allocation6], 256, 256, 16
    $region9: #{tpu_custom_call.1} parent=1 // pred_fallthru
      _
    // Predicated region
    $region10: #{tpu_custom_call.1} parent=1 // pred_check
      _
    $region11: #{tpu_custom_call.1} parent=1 // pred_check_branch
      %41 = sbr.rel (0) target = $region13
    $region12: #{tpu_custom_call.1} parent=1 // pred_region
      _
    $region13: #{tpu_custom_call.1} parent=1 // pred_fallthru
      _
    // Predicated region
    $region14: #{tpu_custom_call.1} parent=1 // pred_check
      _
    $region15: #{tpu_custom_call.1} parent=1 // pred_check_branch
      %43 = sbr.rel (0) target = $region17
    $region16: #{tpu_custom_call.1} parent=1 // pred_region
      %s45 = ssub.s32 16384, 16384
      %46 = vsyncadd [#allocation6], %s45
      %s47 = sshll.u32 [#allocation7], 4
      %s48 = int_to_ptr.vmem [resolvable:$true] %s47
      %53 = dma.hbm_to_vmem [thread:$0]  %s3, 16384, %s48, [#allocation6], 256, 256, 16
    $region17: #{tpu_custom_call.1} parent=1 // pred_fallthru
      _
    // Predicated region
    $region18: #{tpu_custom_call.1} parent=1 // pred_check
      _
    $region19: #{tpu_custom_call.1} parent=1 // pred_check_branch
      %55 = sbr.rel (0) target = $region21
    $region20: #{tpu_custom_call.1} parent=1 // pred_region
      _
    $region21: #{tpu_custom_call.1} parent=1 // pred_fallthru
      _
    // Predicated region
    $region22: #{tpu_custom_call.1} parent=1 // pred_check
      _
    $region23: #{tpu_custom_call.1} parent=1 // pred_check_branch
      %57 = sbr.rel (0) target = $region25
    $region24: #{tpu_custom_call.1} parent=1 // pred_region
      %s59 = ssub.s32 4096, 4096
      %60 = vsyncadd [#allocation9], %s59
      %s61 = sshll.u32 [#allocation8], 4
      %s62 = int_to_ptr.vmem [resolvable:$true] %s61
      %67 = dma.hbm_to_vmem [thread:$0]  %s5, 4096, %s62, [#allocation9], 64, 64, 4
    $region25: #{tpu_custom_call.1} parent=1 // pred_fallthru
      _
    // Predicated region
    $region26: #{tpu_custom_call.1} parent=1 // pred_check
      _
    $region27: #{tpu_custom_call.1} parent=1 // pred_check_branch
      %69 = sbr.rel (0) target = $region29
    $region28: #{tpu_custom_call.1} parent=1 // pred_region
      _
    $region29: #{tpu_custom_call.1} parent=1 // pred_fallthru
      _
    // Predicated region
    $region30: #{tpu_custom_call.1} parent=1 // pred_check
      _
    $region31: #{tpu_custom_call.1} parent=1 // pred_check_branch
      %71 = sbr.rel (0) target = $region33
    $region32: #{tpu_custom_call.1} parent=1 // pred_region
      %72 = dma.done [#allocation3], 256
    $region33: #{tpu_custom_call.1} parent=1 // pred_fallthru
      _
    // Predicated region
    $region34: #{tpu_custom_call.1} parent=1 // pred_check
      _
    $region35: #{tpu_custom_call.1} parent=1 // pred_check_branch
      %74 = sbr.rel (0) target = $region37
    $region36: #{tpu_custom_call.1} parent=1 // pred_region
      %75 = dma.done [#allocation6], 512
    $region37: #{tpu_custom_call.1} parent=1 // pred_fallthru
      _
    // Predicated region
    $region38: #{tpu_custom_call.1} parent=1 // pred_check
      _
    $region39: #{tpu_custom_call.1} parent=1 // pred_check_branch
      %77 = sbr.rel (0) target = $region41
    $region40: #{tpu_custom_call.1} parent=1 // pred_region
      %78 = dma.done [#allocation6], 16384
    $region41: #{tpu_custom_call.1} parent=1 // pred_fallthru
      _
    // Predicated region
    $region42: #{tpu_custom_call.1} parent=1 // pred_check
      _
    $region43: #{tpu_custom_call.1} parent=1 // pred_check_branch
      %80 = sbr.rel (0) target = $region45
    $region44: #{tpu_custom_call.1} parent=1 // pred_region
      %81 = dma.done [#allocation9], 4096
    $region45: #{tpu_custom_call.1} parent=1 // pred_fallthru
      _
    %v83 = vld [vmem:[#allocation2] sm:$0xff]
    %v84 = vld [vmem:[#allocation2 + $0x8] sm:$0xff]
    %v85 = vpack.c.bf16 %v84, %v83
    %v86 = vld [vmem:[#allocation5] sm:$0xff]
    %v87 = vld [vmem:[#allocation5 + $0x8] sm:$0xff]
    %v88 = vld [vmem:[#allocation5 + $0x10] sm:$0xff]
    %v89 = vld [vmem:[#allocation5 + $0x18] sm:$0xff]
    %v94 = vunpack.c.l.b16 %v86
    %v95 = vunpack.c.h.b16 %v86
    %v96 = vunpack.c.l.b16 %v87
    %v97 = vunpack.c.h.b16 %v87
    %v98 = vunpack.c.l.b16 %v88
    %v99 = vunpack.c.h.b16 %v88
    %v100 = vunpack.c.l.b16 %v89
    %v101 = vunpack.c.h.b16 %v89
    %v102 = vpack.c.b16 %v98, %v94
    %v103 = vpack.c.b16 %v99, %v95
    %v104 = vpack.c.b16 %v100, %v96
    %v105 = vpack.c.b16 %v101, %v97
    %vm110 = vcmask 130048
    %v112 = vsel %vm110, %v85, 0
    %114 = vmatprep.subr.bf16.mxu0 %v103
    %115 = vmatpush1.bf16.msra.mxu0 %v102
    %116 = vmatprep.subr.bf16.mxu0 0
    %117 = vmatpush1.bf16.msra.mxu0 0
    %118 = vmatprep.subr.bf16.mxu0 0
    %119 = vmatpush1.bf16.msra.mxu0 0
    %120 = vmatprep.subr.bf16.mxu0 0
    %121 = vmatpush1.bf16.msra.mxu0 0
    %122 = vmatprep.subr.bf16.mxu0 0
    %123 = vmatpush1.bf16.msra.mxu0 0
    %124 = vmatprep.subr.bf16.mxu0 0
    %125 = vmatpush1.bf16.msra.mxu0 0
    %126 = vmatprep.subr.bf16.mxu0 0
    %127 = vmatpush1.bf16.msra.mxu0 0
    %128 = vmatprep.subr.bf16.mxu0 0
    %129 = vmatpush1.bf16.msra.mxu0 0
    %130 = vmatprep.subr.bf16.mxu0 0
    %131 = vmatpush1.bf16.msra.mxu0 0
    %132 = vmatprep.subr.bf16.mxu0 0
    %133 = vmatpush1.bf16.msra.mxu0 0
    %134 = vmatprep.subr.bf16.mxu0 0
    %135 = vmatpush1.bf16.msra.mxu0 0
    %136 = vmatprep.subr.bf16.mxu0 0
    %137 = vmatpush1.bf16.msra.mxu0 0
    %138 = vmatprep.subr.bf16.mxu0 0
    %139 = vmatpush1.bf16.msra.mxu0 0
    %140 = vmatprep.subr.bf16.mxu0 0
    %141 = vmatpush1.bf16.msra.mxu0 0
    %142 = vmatprep.subr.bf16.mxu0 0
    %143 = vmatpush1.bf16.msra.mxu0 0
    %144 = vmatprep.subr.bf16.mxu0 0
    %145 = vmatpush1.bf16.msra.mxu0 0
    %146 = vmatprep.mubr.bf16.mxu0 0
    %147 = vmatmul.mubr.bf16.gmra.mrb[0].mxu0 %v112
    %v148 = vpop.f32.mrb[0].mxu0
    %v149 = vadd.f32 0.0, %v148
    %v150 = vpop.f32.mrb[0].mxu0
    %v151 = vadd.f32 0.0, %v150
    %v152 = vpop.f32.mrb[0].mxu0
    %v153 = vadd.f32 0.0, %v152
    %v154 = vpop.f32.mrb[0].mxu0
    %v155 = vadd.f32 0.0, %v154
    %156 = vdwg.mxu0
    %157 = vmatprep.subr.bf16.mxu0 %v105
    %158 = vmatpush1.bf16.msra.mxu0 %v104
    %159 = vmatprep.subr.bf16.mxu0 0
    %160 = vmatpush1.bf16.msra.mxu0 0
    %161 = vmatprep.subr.bf16.mxu0 0
    %162 = vmatpush1.bf16.msra.mxu0 0
    %163 = vmatprep.subr.bf16.mxu0 0
    %164 = vmatpush1.bf16.msra.mxu0 0
    %165 = vmatprep.subr.bf16.mxu0 0
    %166 = vmatpush1.bf16.msra.mxu0 0
    %167 = vmatprep.subr.bf16.mxu0 0
    %168 = vmatpush1.bf16.msra.mxu0 0
    %169 = vmatprep.subr.bf16.mxu0 0
    %170 = vmatpush1.bf16.msra.mxu0 0
    %171 = vmatprep.subr.bf16.mxu0 0
    %172 = vmatpush1.bf16.msra.mxu0 0
    %173 = vmatprep.subr.bf16.mxu0 0
    %174 = vmatpush1.bf16.msra.mxu0 0
    %175 = vmatprep.subr.bf16.mxu0 0
    %176 = vmatpush1.bf16.msra.mxu0 0
    %177 = vmatprep.subr.bf16.mxu0 0
    %178 = vmatpush1.bf16.msra.mxu0 0
    %179 = vmatprep.subr.bf16.mxu0 0
    %180 = vmatpush1.bf16.msra.mxu0 0
    %181 = vmatprep.subr.bf16.mxu0 0
    %182 = vmatpush1.bf16.msra.mxu0 0
    %183 = vmatprep.subr.bf16.mxu0 0
    %184 = vmatpush1.bf16.msra.mxu0 0
    %185 = vmatprep.subr.bf16.mxu0 0
    %186 = vmatpush1.bf16.msra.mxu0 0
    %187 = vmatprep.subr.bf16.mxu0 0
    %188 = vmatpush1.bf16.msra.mxu0 0
    %189 = vmatprep.mubr.bf16.mxu0 0
    %190 = vmatmul.mubr.bf16.gmra.mrb[0].mxu0 %v112
    %v191 = vpop.f32.mrb[0].mxu0
    %v192 = vadd.f32 0.0, %v191
    %v193 = vpop.f32.mrb[0].mxu0
    %v194 = vadd.f32 0.0, %v193
    %v195 = vpop.f32.mrb[0].mxu0
    %v196 = vadd.f32 0.0, %v195
    %v197 = vpop.f32.mrb[0].mxu0
    %v198 = vadd.f32 0.0, %v197
    %199 = vdwg.mxu0
    %v200 = vpack.c.bf16 %v153, %v149
    %v201 = vpack.c.bf16 %v155, %v151
    %v202 = vpack.c.bf16 %v196, %v192
    %v203 = vpack.c.bf16 %v198, %v194
    %v204 = vld [vmem:[%s2] sm:$0xf]
    %v207 = vunpack.c.l.s4 1966171168
    %v208 = vunpack.c.0.s8 %v207
    %v209 = vlaneseq
    %v210 = vshrl.u32 %v209, 7
    %v211 = vsub.s32 %v208, %v210
    %v212 = vrot.slane %v204, %v211
    %v213 = vcombine.high %v212, %v212
    %v215 = vunpack.c.l.s4 1966171168
    %v216 = vunpack.c.0.s8 %v215
    %v217 = vlaneseq
    %v218 = vshrl.u32 %v217, 7
    %v219 = vsub.s32 %v216, %v218
    %v220 = vrot.slane %v212, %v219
    %v222 = vunpack.c.l.s4 1966171168
    %v223 = vunpack.c.0.s8 %v222
    %v224 = vlaneseq
    %v225 = vshrl.u32 %v224, 7
    %v226 = vsub.s32 %v223, %v225
    %v227 = vrot.slane %v213, %v226
    %v228 = vcombine.high %v220, %v220
    %v229 = vcombine.high %v227, %v227
    %v231 = vpack.i.b16 %v220, %v220
    %v233 = vlaneseq
    %v234 = vshrl.u32 %v233, 7
    %v235 = vsub.s32 0, %v234
    %v236 = vrot.slane %v231, %v235
    %v238 = vpack.i.b16 %v227, %v227
    %v240 = vlaneseq
    %v241 = vshrl.u32 %v240, 7
    %v242 = vsub.s32 0, %v241
    %v243 = vrot.slane %v238, %v242
    %v245 = vpack.i.b16 %v228, %v228
    %v247 = vlaneseq
    %v248 = vshrl.u32 %v247, 7
    %v249 = vsub.s32 0, %v248
    %v250 = vrot.slane %v245, %v249
    %v252 = vpack.i.b16 %v229, %v229
    %v254 = vlaneseq
    %v255 = vshrl.u32 %v254, 7
    %v256 = vsub.s32 0, %v255
    %v257 = vrot.slane %v252, %v256
    %v258 = vadd.bf16 %v200, %v236
    %v259 = vadd.bf16 %v201, %v243
    %v260 = vadd.bf16 %v202, %v250
    %v261 = vadd.bf16 %v203, %v257
    %v262 = vmax.bf16 %v258, 0
    %v263 = vmax.bf16 %v259, 0
    %v264 = vmax.bf16 %v260, 0
    %v265 = vmax.bf16 %v261, 0
    %v266 = vld [vmem:[#allocation7] sm:$0xff]
    %v267 = vld [vmem:[#allocation7 + $0x8] sm:$0xff]
    %v268 = vld [vmem:[#allocation7 + $0x10] sm:$0xff]
    %v269 = vld [vmem:[#allocation7 + $0x18] sm:$0xff]
    %v270 = vld [vmem:[#allocation7 + $0x20] sm:$0xff]
    %v271 = vld [vmem:[#allocation7 + $0x28] sm:$0xff]
    %v272 = vld [vmem:[#allocation7 + $0x30] sm:$0xff]
    %v273 = vld [vmem:[#allocation7 + $0x38] sm:$0xff]
    %v274 = vld [vmem:[#allocation7 + $0x40] sm:$0xff]
    %v275 = vld [vmem:[#allocation7 + $0x48] sm:$0xff]
    %v276 = vld [vmem:[#allocation7 + $0x50] sm:$0xff]
    %v277 = vld [vmem:[#allocation7 + $0x58] sm:$0xff]
    %v278 = vld [vmem:[#allocation7 + $0x60] sm:$0xff]
    %v279 = vld [vmem:[#allocation7 + $0x68] sm:$0xff]
    %v280 = vld [vmem:[#allocation7 + $0x70] sm:$0xff]
    %v281 = vld [vmem:[#allocation7 + $0x78] sm:$0xff]
    %v282 = vld [vmem:[#allocation7 + $0x80] sm:$0xff]
    %v283 = vld [vmem:[#allocation7 + $0x88] sm:$0xff]
    %v284 = vld [vmem:[#allocation7 + $0x90] sm:$0xff]
    %v285 = vld [vmem:[#allocation7 + $0x98] sm:$0xff]
    %v286 = vld [vmem:[#allocation7 + $0xa0] sm:$0xff]
    %v287 = vld [vmem:[#allocation7 + $0xa8] sm:$0xff]
    %v288 = vld [vmem:[#allocation7 + $0xb0] sm:$0xff]
    %v289 = vld [vmem:[#allocation7 + $0xb8] sm:$0xff]
    %v290 = vld [vmem:[#allocation7 + $0xc0] sm:$0xff]
    %v291 = vld [vmem:[#allocation7 + $0xc8] sm:$0xff]
    %v292 = vld [vmem:[#allocation7 + $0xd0] sm:$0xff]
    %v293 = vld [vmem:[#allocation7 + $0xd8] sm:$0xff]
    %v294 = vld [vmem:[#allocation7 + $0xe0] sm:$0xff]
    %v295 = vld [vmem:[#allocation7 + $0xe8] sm:$0xff]
    %v296 = vld [vmem:[#allocation7 + $0xf0] sm:$0xff]
    %v297 = vld [vmem:[#allocation7 + $0xf8] sm:$0xff]
    %v298 = vld [vmem:[#allocation7 + $0x100] sm:$0xff]
    %v299 = vld [vmem:[#allocation7 + $0x108] sm:$0xff]
    %v300 = vld [vmem:[#allocation7 + $0x110] sm:$0xff]
    %v301 = vld [vmem:[#allocation7 + $0x118] sm:$0xff]
    %v302 = vld [vmem:[#allocation7 + $0x120] sm:$0xff]
    %v303 = vld [vmem:[#allocation7 + $0x128] sm:$0xff]
    %v304 = vld [vmem:[#allocation7 + $0x130] sm:$0xff]
    %v305 = vld [vmem:[#allocation7 + $0x138] sm:$0xff]
    %v306 = vld [vmem:[#allocation7 + $0x140] sm:$0xff]
    %v307 = vld [vmem:[#allocation7 + $0x148] sm:$0xff]
    %v308 = vld [vmem:[#allocation7 + $0x150] sm:$0xff]
    %v309 = vld [vmem:[#allocation7 + $0x158] sm:$0xff]
    %v310 = vld [vmem:[#allocation7 + $0x160] sm:$0xff]
    %v311 = vld [vmem:[#allocation7 + $0x168] sm:$0xff]
    %v312 = vld [vmem:[#allocation7 + $0x170] sm:$0xff]
    %v313 = vld [vmem:[#allocation7 + $0x178] sm:$0xff]
    %v314 = vld [vmem:[#allocation7 + $0x180] sm:$0xff]
    %v315 = vld [vmem:[#allocation7 + $0x188] sm:$0xff]
    %v316 = vld [vmem:[#allocation7 + $0x190] sm:$0xff]
    %v317 = vld [vmem:[#allocation7 + $0x198] sm:$0xff]
    %v318 = vld [vmem:[#allocation7 + $0x1a0] sm:$0xff]
    %v319 = vld [vmem:[#allocation7 + $0x1a8] sm:$0xff]
    %v320 = vld [vmem:[#allocation7 + $0x1b0] sm:$0xff]
    %v321 = vld [vmem:[#allocation7 + $0x1b8] sm:$0xff]
    %v322 = vld [vmem:[#allocation7 + $0x1c0] sm:$0xff]
    %v323 = vld [vmem:[#allocation7 + $0x1c8] sm:$0xff]
    %v324 = vld [vmem:[#allocation7 + $0x1d0] sm:$0xff]
    %v325 = vld [vmem:[#allocation7 + $0x1d8] sm:$0xff]
    %v326 = vld [vmem:[#allocation7 + $0x1e0] sm:$0xff]
    %v327 = vld [vmem:[#allocation7 + $0x1e8] sm:$0xff]
    %v328 = vld [vmem:[#allocation7 + $0x1f0] sm:$0xff]
    %v329 = vld [vmem:[#allocation7 + $0x1f8] sm:$0xff]
    %v330 = vld [vmem:[#allocation7 + $0x200] sm:$0xff]
    %v331 = vld [vmem:[#allocation7 + $0x208] sm:$0xff]
    %v332 = vld [vmem:[#allocation7 + $0x210] sm:$0xff]
    %v333 = vld [vmem:[#allocation7 + $0x218] sm:$0xff]
    %v334 = vld [vmem:[#allocation7 + $0x220] sm:$0xff]
    %v335 = vld [vmem:[#allocation7 + $0x228] sm:$0xff]
    %v336 = vld [vmem:[#allocation7 + $0x230] sm:$0xff]
    %v337 = vld [vmem:[#allocation7 + $0x238] sm:$0xff]
    %v338 = vld [vmem:[#allocation7 + $0x240] sm:$0xff]
    %v339 = vld [vmem:[#allocation7 + $0x248] sm:$0xff]
    %v340 = vld [vmem:[#allocation7 + $0x250] sm:$0xff]
    %v341 = vld [vmem:[#allocation7 + $0x258] sm:$0xff]
    %v342 = vld [vmem:[#allocation7 + $0x260] sm:$0xff]
    %v343 = vld [vmem:[#allocation7 + $0x268] sm:$0xff]
    %v344 = vld [vmem:[#allocation7 + $0x270] sm:$0xff]
    %v345 = vld [vmem:[#allocation7 + $0x278] sm:$0xff]
    %v346 = vld [vmem:[#allocation7 + $0x280] sm:$0xff]
    %v347 = vld [vmem:[#allocation7 + $0x288] sm:$0xff]
    %v348 = vld [vmem:[#allocation7 + $0x290] sm:$0xff]
    %v349 = vld [vmem:[#allocation7 + $0x298] sm:$0xff]
    %v350 = vld [vmem:[#allocation7 + $0x2a0] sm:$0xff]
    %v351 = vld [vmem:[#allocation7 + $0x2a8] sm:$0xff]
    %v352 = vld [vmem:[#allocation7 + $0x2b0] sm:$0xff]
    %v353 = vld [vmem:[#allocation7 + $0x2b8] sm:$0xff]
    %v354 = vld [vmem:[#allocation7 + $0x2c0] sm:$0xff]
    %v355 = vld [vmem:[#allocation7 + $0x2c8] sm:$0xff]
    %v356 = vld [vmem:[#allocation7 + $0x2d0] sm:$0xff]
    %v357 = vld [vmem:[#allocation7 + $0x2d8] sm:$0xff]
    %v358 = vld [vmem:[#allocation7 + $0x2e0] sm:$0xff]
    %v359 = vld [vmem:[#allocation7 + $0x2e8] sm:$0xff]
    %v360 = vld [vmem:[#allocation7 + $0x2f0] sm:$0xff]
    %v361 = vld [vmem:[#allocation7 + $0x2f8] sm:$0xff]
    %v362 = vld [vmem:[#allocation7 + $0x300] sm:$0xff]
    %v363 = vld [vmem:[#allocation7 + $0x308] sm:$0xff]
    %v364 = vld [vmem:[#allocation7 + $0x310] sm:$0xff]
    %v365 = vld [vmem:[#allocation7 + $0x318] sm:$0xff]
    %v366 = vld [vmem:[#allocation7 + $0x320] sm:$0xff]
    %v367 = vld [vmem:[#allocation7 + $0x328] sm:$0xff]
    %v368 = vld [vmem:[#allocation7 + $0x330] sm:$0xff]
    %v369 = vld [vmem:[#allocation7 + $0x338] sm:$0xff]
    %v370 = vld [vmem:[#allocation7 + $0x340] sm:$0xff]
    %v371 = vld [vmem:[#allocation7 + $0x348] sm:$0xff]
    %v372 = vld [vmem:[#allocation7 + $0x350] sm:$0xff]
    %v373 = vld [vmem:[#allocation7 + $0x358] sm:$0xff]
    %v374 = vld [vmem:[#allocation7 + $0x360] sm:$0xff]
    %v375 = vld [vmem:[#allocation7 + $0x368] sm:$0xff]
    %v376 = vld [vmem:[#allocation7 + $0x370] sm:$0xff]
    %v377 = vld [vmem:[#allocation7 + $0x378] sm:$0xff]
    %v378 = vld [vmem:[#allocation7 + $0x380] sm:$0xff]
    %v379 = vld [vmem:[#allocation7 + $0x388] sm:$0xff]
    %v380 = vld [vmem:[#allocation7 + $0x390] sm:$0xff]
    %v381 = vld [vmem:[#allocation7 + $0x398] sm:$0xff]
    %v382 = vld [vmem:[#allocation7 + $0x3a0] sm:$0xff]
    %v383 = vld [vmem:[#allocation7 + $0x3a8] sm:$0xff]
    %v384 = vld [vmem:[#allocation7 + $0x3b0] sm:$0xff]
    %v385 = vld [vmem:[#allocation7 + $0x3b8] sm:$0xff]
    %v386 = vld [vmem:[#allocation7 + $0x3c0] sm:$0xff]
    %v387 = vld [vmem:[#allocation7 + $0x3c8] sm:$0xff]
    %v388 = vld [vmem:[#allocation7 + $0x3d0] sm:$0xff]
    %v389 = vld [vmem:[#allocation7 + $0x3d8] sm:$0xff]
    %v390 = vld [vmem:[#allocation7 + $0x3e0] sm:$0xff]
    %v391 = vld [vmem:[#allocation7 + $0x3e8] sm:$0xff]
    %v392 = vld [vmem:[#allocation7 + $0x3f0] sm:$0xff]
    %v393 = vld [vmem:[#allocation7 + $0x3f8] sm:$0xff]
    %v522 = vunpack.c.l.b16 %v266
    %v523 = vunpack.c.h.b16 %v266
    %v524 = vunpack.c.l.b16 %v267
    %v525 = vunpack.c.h.b16 %v267
    %v526 = vunpack.c.l.b16 %v268
    %v527 = vunpack.c.h.b16 %v268
    %v528 = vunpack.c.l.b16 %v269
    %v529 = vunpack.c.h.b16 %v269
    %v530 = vunpack.c.l.b16 %v270
    %v531 = vunpack.c.h.b16 %v270
    %v532 = vunpack.c.l.b16 %v271
    %v533 = vunpack.c.h.b16 %v271
    %v534 = vunpack.c.l.b16 %v272
    %v535 = vunpack.c.h.b16 %v272
    %v536 = vunpack.c.l.b16 %v273
    %v537 = vunpack.c.h.b16 %v273
    %v538 = vunpack.c.l.b16 %v274
    %v539 = vunpack.c.h.b16 %v274
    %v540 = vunpack.c.l.b16 %v275
    %v541 = vunpack.c.h.b16 %v275
    %v542 = vunpack.c.l.b16 %v276
    %v543 = vunpack.c.h.b16 %v276
    %v544 = vunpack.c.l.b16 %v277
    %v545 = vunpack.c.h.b16 %v277
    %v546 = vunpack.c.l.b16 %v278
    %v547 = vunpack.c.h.b16 %v278
    %v548 = vunpack.c.l.b16 %v279
    %v549 = vunpack.c.h.b16 %v279
    %v550 = vunpack.c.l.b16 %v280
    %v551 = vunpack.c.h.b16 %v280
    %v552 = vunpack.c.l.b16 %v281
    %v553 = vunpack.c.h.b16 %v281
    %v554 = vunpack.c.l.b16 %v282
    %v555 = vunpack.c.h.b16 %v282
    %v556 = vunpack.c.l.b16 %v283
    %v557 = vunpack.c.h.b16 %v283
    %v558 = vunpack.c.l.b16 %v284
    %v559 = vunpack.c.h.b16 %v284
    %v560 = vunpack.c.l.b16 %v285
    %v561 = vunpack.c.h.b16 %v285
    %v562 = vunpack.c.l.b16 %v286
    %v563 = vunpack.c.h.b16 %v286
    %v564 = vunpack.c.l.b16 %v287
    %v565 = vunpack.c.h.b16 %v287
    %v566 = vunpack.c.l.b16 %v288
    %v567 = vunpack.c.h.b16 %v288
    %v568 = vunpack.c.l.b16 %v289
    %v569 = vunpack.c.h.b16 %v289
    %v570 = vunpack.c.l.b16 %v290
    %v571 = vunpack.c.h.b16 %v290
    %v572 = vunpack.c.l.b16 %v291
    %v573 = vunpack.c.h.b16 %v291
    %v574 = vunpack.c.l.b16 %v292
    %v575 = vunpack.c.h.b16 %v292
    %v576 = vunpack.c.l.b16 %v293
    %v577 = vunpack.c.h.b16 %v293
    %v578 = vunpack.c.l.b16 %v294
    %v579 = vunpack.c.h.b16 %v294
    %v580 = vunpack.c.l.b16 %v295
    %v581 = vunpack.c.h.b16 %v295
    %v582 = vunpack.c.l.b16 %v296
    %v583 = vunpack.c.h.b16 %v296
    %v584 = vunpack.c.l.b16 %v297
    %v585 = vunpack.c.h.b16 %v297
    %v586 = vunpack.c.l.b16 %v298
    %v587 = vunpack.c.h.b16 %v298
    %v588 = vunpack.c.l.b16 %v299
    %v589 = vunpack.c.h.b16 %v299
    %v590 = vunpack.c.l.b16 %v300
    %v591 = vunpack.c.h.b16 %v300
    %v592 = vunpack.c.l.b16 %v301
    %v593 = vunpack.c.h.b16 %v301
    %v594 = vunpack.c.l.b16 %v302
    %v595 = vunpack.c.h.b16 %v302
    %v596 = vunpack.c.l.b16 %v303
    %v597 = vunpack.c.h.b16 %v303
    %v598 = vunpack.c.l.b16 %v304
    %v599 = vunpack.c.h.b16 %v304
    %v600 = vunpack.c.l.b16 %v305
    %v601 = vunpack.c.h.b16 %v305
    %v602 = vunpack.c.l.b16 %v306
    %v603 = vunpack.c.h.b16 %v306
    %v604 = vunpack.c.l.b16 %v307
    %v605 = vunpack.c.h.b16 %v307
    %v606 = vunpack.c.l.b16 %v308
    %v607 = vunpack.c.h.b16 %v308
    %v608 = vunpack.c.l.b16 %v309
    %v609 = vunpack.c.h.b16 %v309
    %v610 = vunpack.c.l.b16 %v310
    %v611 = vunpack.c.h.b16 %v310
    %v612 = vunpack.c.l.b16 %v311
    %v613 = vunpack.c.h.b16 %v311
    %v614 = vunpack.c.l.b16 %v312
    %v615 = vunpack.c.h.b16 %v312
    %v616 = vunpack.c.l.b16 %v313
    %v617 = vunpack.c.h.b16 %v313
    %v618 = vunpack.c.l.b16 %v314
    %v619 = vunpack.c.h.b16 %v314
    %v620 = vunpack.c.l.b16 %v315
    %v621 = vunpack.c.h.b16 %v315
    %v622 = vunpack.c.l.b16 %v316
    %v623 = vunpack.c.h.b16 %v316
    %v624 = vunpack.c.l.b16 %v317
    %v625 = vunpack.c.h.b16 %v317
    %v626 = vunpack.c.l.b16 %v318
    %v627 = vunpack.c.h.b16 %v318
    %v628 = vunpack.c.l.b16 %v319
    %v629 = vunpack.c.h.b16 %v319
    %v630 = vunpack.c.l.b16 %v320
    %v631 = vunpack.c.h.b16 %v320
    %v632 = vunpack.c.l.b16 %v321
    %v633 = vunpack.c.h.b16 %v321
    %v634 = vunpack.c.l.b16 %v322
    %v635 = vunpack.c.h.b16 %v322
    %v636 = vunpack.c.l.b16 %v323
    %v637 = vunpack.c.h.b16 %v323
    %v638 = vunpack.c.l.b16 %v324
    %v639 = vunpack.c.h.b16 %v324
    %v640 = vunpack.c.l.b16 %v325
    %v641 = vunpack.c.h.b16 %v325
    %v642 = vunpack.c.l.b16 %v326
    %v643 = vunpack.c.h.b16 %v326
    %v644 = vunpack.c.l.b16 %v327
    %v645 = vunpack.c.h.b16 %v327
    %v646 = vunpack.c.l.b16 %v328
    %v647 = vunpack.c.h.b16 %v328
    %v648 = vunpack.c.l.b16 %v329
    %v649 = vunpack.c.h.b16 %v329
    %v650 = vunpack.c.l.b16 %v330
    %v651 = vunpack.c.h.b16 %v330
    %v652 = vunpack.c.l.b16 %v331
    %v653 = vunpack.c.h.b16 %v331
    %v654 = vunpack.c.l.b16 %v332
    %v655 = vunpack.c.h.b16 %v332
    %v656 = vunpack.c.l.b16 %v333
    %v657 = vunpack.c.h.b16 %v333
    %v658 = vunpack.c.l.b16 %v334
    %v659 = vunpack.c.h.b16 %v334
    %v660 = vunpack.c.l.b16 %v335
    %v661 = vunpack.c.h.b16 %v335
    %v662 = vunpack.c.l.b16 %v336
    %v663 = vunpack.c.h.b16 %v336
    %v664 = vunpack.c.l.b16 %v337
    %v665 = vunpack.c.h.b16 %v337
    %v666 = vunpack.c.l.b16 %v338
    %v667 = vunpack.c.h.b16 %v338
    %v668 = vunpack.c.l.b16 %v339
    %v669 = vunpack.c.h.b16 %v339
    %v670 = vunpack.c.l.b16 %v340
    %v671 = vunpack.c.h.b16 %v340
    %v672 = vunpack.c.l.b16 %v341
    %v673 = vunpack.c.h.b16 %v341
    %v674 = vunpack.c.l.b16 %v342
    %v675 = vunpack.c.h.b16 %v342
    %v676 = vunpack.c.l.b16 %v343
    %v677 = vunpack.c.h.b16 %v343
    %v678 = vunpack.c.l.b16 %v344
    %v679 = vunpack.c.h.b16 %v344
    %v680 = vunpack.c.l.b16 %v345
    %v681 = vunpack.c.h.b16 %v345
    %v682 = vunpack.c.l.b16 %v346
    %v683 = vunpack.c.h.b16 %v346
    %v684 = vunpack.c.l.b16 %v347
    %v685 = vunpack.c.h.b16 %v347
    %v686 = vunpack.c.l.b16 %v348
    %v687 = vunpack.c.h.b16 %v348
    %v688 = vunpack.c.l.b16 %v349
    %v689 = vunpack.c.h.b16 %v349
    %v690 = vunpack.c.l.b16 %v350
    %v691 = vunpack.c.h.b16 %v350
    %v692 = vunpack.c.l.b16 %v351
    %v693 = vunpack.c.h.b16 %v351
    %v694 = vunpack.c.l.b16 %v352
    %v695 = vunpack.c.h.b16 %v352
    %v696 = vunpack.c.l.b16 %v353
    %v697 = vunpack.c.h.b16 %v353
    %v698 = vunpack.c.l.b16 %v354
    %v699 = vunpack.c.h.b16 %v354
    %v700 = vunpack.c.l.b16 %v355
    %v701 = vunpack.c.h.b16 %v355
    %v702 = vunpack.c.l.b16 %v356
    %v703 = vunpack.c.h.b16 %v356
    %v704 = vunpack.c.l.b16 %v357
    %v705 = vunpack.c.h.b16 %v357
    %v706 = vunpack.c.l.b16 %v358
    %v707 = vunpack.c.h.b16 %v358
    %v708 = vunpack.c.l.b16 %v359
    %v709 = vunpack.c.h.b16 %v359
    %v710 = vunpack.c.l.b16 %v360
    %v711 = vunpack.c.h.b16 %v360
    %v712 = vunpack.c.l.b16 %v361
    %v713 = vunpack.c.h.b16 %v361
    %v714 = vunpack.c.l.b16 %v362
    %v715 = vunpack.c.h.b16 %v362
    %v716 = vunpack.c.l.b16 %v363
    %v717 = vunpack.c.h.b16 %v363
    %v718 = vunpack.c.l.b16 %v364
    %v719 = vunpack.c.h.b16 %v364
    %v720 = vunpack.c.l.b16 %v365
    %v721 = vunpack.c.h.b16 %v365
    %v722 = vunpack.c.l.b16 %v366
    %v723 = vunpack.c.h.b16 %v366
    %v724 = vunpack.c.l.b16 %v367
    %v725 = vunpack.c.h.b16 %v367
    %v726 = vunpack.c.l.b16 %v368
    %v727 = vunpack.c.h.b16 %v368
    %v728 = vunpack.c.l.b16 %v369
    %v729 = vunpack.c.h.b16 %v369
    %v730 = vunpack.c.l.b16 %v370
    %v731 = vunpack.c.h.b16 %v370
    %v732 = vunpack.c.l.b16 %v371
    %v733 = vunpack.c.h.b16 %v371
    %v734 = vunpack.c.l.b16 %v372
    %v735 = vunpack.c.h.b16 %v372
    %v736 = vunpack.c.l.b16 %v373
    %v737 = vunpack.c.h.b16 %v373
    %v738 = vunpack.c.l.b16 %v374
    %v739 = vunpack.c.h.b16 %v374
    %v740 = vunpack.c.l.b16 %v375
    %v741 = vunpack.c.h.b16 %v375
    %v742 = vunpack.c.l.b16 %v376
    %v743 = vunpack.c.h.b16 %v376
    %v744 = vunpack.c.l.b16 %v377
    %v745 = vunpack.c.h.b16 %v377
    %v746 = vunpack.c.l.b16 %v378
    %v747 = vunpack.c.h.b16 %v378
    %v748 = vunpack.c.l.b16 %v379
    %v749 = vunpack.c.h.b16 %v379
    %v750 = vunpack.c.l.b16 %v380
    %v751 = vunpack.c.h.b16 %v380
    %v752 = vunpack.c.l.b16 %v381
    %v753 = vunpack.c.h.b16 %v381
    %v754 = vunpack.c.l.b16 %v382
    %v755 = vunpack.c.h.b16 %v382
    %v756 = vunpack.c.l.b16 %v383
    %v757 = vunpack.c.h.b16 %v383
    %v758 = vunpack.c.l.b16 %v384
    %v759 = vunpack.c.h.b16 %v384
    %v760 = vunpack.c.l.b16 %v385
    %v761 = vunpack.c.h.b16 %v385
    %v762 = vunpack.c.l.b16 %v386
    %v763 = vunpack.c.h.b16 %v386
    %v764 = vunpack.c.l.b16 %v387
    %v765 = vunpack.c.h.b16 %v387
    %v766 = vunpack.c.l.b16 %v388
    %v767 = vunpack.c.h.b16 %v388
    %v768 = vunpack.c.l.b16 %v389
    %v769 = vunpack.c.h.b16 %v389
    %v770 = vunpack.c.l.b16 %v390
    %v771 = vunpack.c.h.b16 %v390
    %v772 = vunpack.c.l.b16 %v391
    %v773 = vunpack.c.h.b16 %v391
    %v774 = vunpack.c.l.b16 %v392
    %v775 = vunpack.c.h.b16 %v392
    %v776 = vunpack.c.l.b16 %v393
    %v777 = vunpack.c.h.b16 %v393
    %v778 = vpack.c.b16 %v526, %v522
    %v779 = vpack.c.b16 %v527, %v523
    %v780 = vpack.c.b16 %v528, %v524
    %v781 = vpack.c.b16 %v529, %v525
    %v782 = vpack.c.b16 %v534, %v530
    %v783 = vpack.c.b16 %v535, %v531
    %v784 = vpack.c.b16 %v536, %v532
    %v785 = vpack.c.b16 %v537, %v533
    %v786 = vpack.c.b16 %v542, %v538
    %v787 = vpack.c.b16 %v543, %v539
    %v788 = vpack.c.b16 %v544, %v540
    %v789 = vpack.c.b16 %v545, %v541
    %v790 = vpack.c.b16 %v550, %v546
    %v791 = vpack.c.b16 %v551, %v547
    %v792 = vpack.c.b16 %v552, %v548
    %v793 = vpack.c.b16 %v553, %v549
    %v794 = vpack.c.b16 %v558, %v554
    %v795 = vpack.c.b16 %v559, %v555
    %v796 = vpack.c.b16 %v560, %v556
    %v797 = vpack.c.b16 %v561, %v557
    %v798 = vpack.c.b16 %v566, %v562
    %v799 = vpack.c.b16 %v567, %v563
    %v800 = vpack.c.b16 %v568, %v564
    %v801 = vpack.c.b16 %v569, %v565
    %v802 = vpack.c.b16 %v574, %v570
    %v803 = vpack.c.b16 %v575, %v571
    %v804 = vpack.c.b16 %v576, %v572
    %v805 = vpack.c.b16 %v577, %v573
    %v806 = vpack.c.b16 %v582, %v578
    %v807 = vpack.c.b16 %v583, %v579
    %v808 = vpack.c.b16 %v584, %v580
    %v809 = vpack.c.b16 %v585, %v581
    %v810 = vpack.c.b16 %v590, %v586
    %v811 = vpack.c.b16 %v591, %v587
    %v812 = vpack.c.b16 %v592, %v588
    %v813 = vpack.c.b16 %v593, %v589
    %v814 = vpack.c.b16 %v598, %v594
    %v815 = vpack.c.b16 %v599, %v595
    %v816 = vpack.c.b16 %v600, %v596
    %v817 = vpack.c.b16 %v601, %v597
    %v818 = vpack.c.b16 %v606, %v602
    %v819 = vpack.c.b16 %v607, %v603
    %v820 = vpack.c.b16 %v608, %v604
    %v821 = vpack.c.b16 %v609, %v605
    %v822 = vpack.c.b16 %v614, %v610
    %v823 = vpack.c.b16 %v615, %v611
    %v824 = vpack.c.b16 %v616, %v612
    %v825 = vpack.c.b16 %v617, %v613
    %v826 = vpack.c.b16 %v622, %v618
    %v827 = vpack.c.b16 %v623, %v619
    %v828 = vpack.c.b16 %v624, %v620
    %v829 = vpack.c.b16 %v625, %v621
    %v830 = vpack.c.b16 %v630, %v626
    %v831 = vpack.c.b16 %v631, %v627
    %v832 = vpack.c.b16 %v632, %v628
    %v833 = vpack.c.b16 %v633, %v629
    %v834 = vpack.c.b16 %v638, %v634
    %v835 = vpack.c.b16 %v639, %v635
    %v836 = vpack.c.b16 %v640, %v636
    %v837 = vpack.c.b16 %v641, %v637
    %v838 = vpack.c.b16 %v646, %v642
    %v839 = vpack.c.b16 %v647, %v643
    %v840 = vpack.c.b16 %v648, %v644
    %v841 = vpack.c.b16 %v649, %v645
    %v842 = vpack.c.b16 %v654, %v650
    %v843 = vpack.c.b16 %v655, %v651
    %v844 = vpack.c.b16 %v656, %v652
    %v845 = vpack.c.b16 %v657, %v653
    %v846 = vpack.c.b16 %v662, %v658
    %v847 = vpack.c.b16 %v663, %v659
    %v848 = vpack.c.b16 %v664, %v660
    %v849 = vpack.c.b16 %v665, %v661
    %v850 = vpack.c.b16 %v670, %v666
    %v851 = vpack.c.b16 %v671, %v667
    %v852 = vpack.c.b16 %v672, %v668
    %v853 = vpack.c.b16 %v673, %v669
    %v854 = vpack.c.b16 %v678, %v674
    %v855 = vpack.c.b16 %v679, %v675
    %v856 = vpack.c.b16 %v680, %v676
    %v857 = vpack.c.b16 %v681, %v677
    %v858 = vpack.c.b16 %v686, %v682
    %v859 = vpack.c.b16 %v687, %v683
    %v860 = vpack.c.b16 %v688, %v684
    %v861 = vpack.c.b16 %v689, %v685
    %v862 = vpack.c.b16 %v694, %v690
    %v863 = vpack.c.b16 %v695, %v691
    %v864 = vpack.c.b16 %v696, %v692
    %v865 = vpack.c.b16 %v697, %v693
    %v866 = vpack.c.b16 %v702, %v698
    %v867 = vpack.c.b16 %v703, %v699
    %v868 = vpack.c.b16 %v704, %v700
    %v869 = vpack.c.b16 %v705, %v701
    %v870 = vpack.c.b16 %v710, %v706
    %v871 = vpack.c.b16 %v711, %v707
    %v872 = vpack.c.b16 %v712, %v708
    %v873 = vpack.c.b16 %v713, %v709
    %v874 = vpack.c.b16 %v718, %v714
    %v875 = vpack.c.b16 %v719, %v715
    %v876 = vpack.c.b16 %v720, %v716
    %v877 = vpack.c.b16 %v721, %v717
    %v878 = vpack.c.b16 %v726, %v722
    %v879 = vpack.c.b16 %v727, %v723
    %v880 = vpack.c.b16 %v728, %v724
    %v881 = vpack.c.b16 %v729, %v725
    %v882 = vpack.c.b16 %v734, %v730
    %v883 = vpack.c.b16 %v735, %v731
    %v884 = vpack.c.b16 %v736, %v732
    %v885 = vpack.c.b16 %v737, %v733
    %v886 = vpack.c.b16 %v742, %v738
    %v887 = vpack.c.b16 %v743, %v739
    %v888 = vpack.c.b16 %v744, %v740
    %v889 = vpack.c.b16 %v745, %v741
    %v890 = vpack.c.b16 %v750, %v746
    %v891 = vpack.c.b16 %v751, %v747
    %v892 = vpack.c.b16 %v752, %v748
    %v893 = vpack.c.b16 %v753, %v749
    %v894 = vpack.c.b16 %v758, %v754
    %v895 = vpack.c.b16 %v759, %v755
    %v896 = vpack.c.b16 %v760, %v756
    %v897 = vpack.c.b16 %v761, %v757
    %v898 = vpack.c.b16 %v766, %v762
    %v899 = vpack.c.b16 %v767, %v763
    %v900 = vpack.c.b16 %v768, %v764
    %v901 = vpack.c.b16 %v769, %v765
    %v902 = vpack.c.b16 %v774, %v770
    %v903 = vpack.c.b16 %v775, %v771
    %v904 = vpack.c.b16 %v776, %v772
    %v905 = vpack.c.b16 %v777, %v773
    %1034 = vmatprep.subr.bf16.mxu0 %v779
    %1035 = vmatpush1.bf16.msra.mxu0 %v778
    %1036 = vmatprep.subr.bf16.mxu0 %v783
    %1037 = vmatpush1.bf16.msra.mxu0 %v782
    %1038 = vmatprep.subr.bf16.mxu0 %v787
    %1039 = vmatpush1.bf16.msra.mxu0 %v786
    %1040 = vmatprep.subr.bf16.mxu0 %v791
    %1041 = vmatpush1.bf16.msra.mxu0 %v790
    %1042 = vmatprep.subr.bf16.mxu0 %v795
    %1043 = vmatpush1.bf16.msra.mxu0 %v794
    %1044 = vmatprep.subr.bf16.mxu0 %v799
    %1045 = vmatpush1.bf16.msra.mxu0 %v798
    %1046 = vmatprep.subr.bf16.mxu0 %v803
    %1047 = vmatpush1.bf16.msra.mxu0 %v802
    %1048 = vmatprep.subr.bf16.mxu0 %v807
    %1049 = vmatpush1.bf16.msra.mxu0 %v806
    %1050 = vmatprep.subr.bf16.mxu0 %v811
    %1051 = vmatpush1.bf16.msra.mxu0 %v810
    %1052 = vmatprep.subr.bf16.mxu0 %v815
    %1053 = vmatpush1.bf16.msra.mxu0 %v814
    %1054 = vmatprep.subr.bf16.mxu0 %v819
    %1055 = vmatpush1.bf16.msra.mxu0 %v818
    %1056 = vmatprep.subr.bf16.mxu0 %v823
    %1057 = vmatpush1.bf16.msra.mxu0 %v822
    %1058 = vmatprep.subr.bf16.mxu0 %v827
    %1059 = vmatpush1.bf16.msra.mxu0 %v826
    %1060 = vmatprep.subr.bf16.mxu0 %v831
    %1061 = vmatpush1.bf16.msra.mxu0 %v830
    %1062 = vmatprep.subr.bf16.mxu0 %v835
    %1063 = vmatpush1.bf16.msra.mxu0 %v834
    %1064 = vmatprep.subr.bf16.mxu0 %v839
    %1065 = vmatpush1.bf16.msra.mxu0 %v838
    %1066 = vmatprep.mubr.bf16.mxu0 %v263
    %1067 = vmatmul.mubr.bf16.gmra.mrb[0].mxu0 %v262
    %v1068 = vpop.f32.mrb[0].mxu0
    %v1069 = vadd.f32 0.0, %v1068
    %v1070 = vpop.f32.mrb[0].mxu0
    %v1071 = vadd.f32 0.0, %v1070
    %v1072 = vpop.f32.mrb[0].mxu0
    %v1073 = vadd.f32 0.0, %v1072
    %v1074 = vpop.f32.mrb[0].mxu0
    %v1075 = vadd.f32 0.0, %v1074
    %1076 = vdwg.mxu0
    %1077 = vmatprep.subr.bf16.mxu0 %v843
    %1078 = vmatpush1.bf16.msra.mxu0 %v842
    %1079 = vmatprep.subr.bf16.mxu0 %v847
    %1080 = vmatpush1.bf16.msra.mxu0 %v846
    %1081 = vmatprep.subr.bf16.mxu0 %v851
    %1082 = vmatpush1.bf16.msra.mxu0 %v850
    %1083 = vmatprep.subr.bf16.mxu0 %v855
    %1084 = vmatpush1.bf16.msra.mxu0 %v854
    %1085 = vmatprep.subr.bf16.mxu0 %v859
    %1086 = vmatpush1.bf16.msra.mxu0 %v858
    %1087 = vmatprep.subr.bf16.mxu0 %v863
    %1088 = vmatpush1.bf16.msra.mxu0 %v862
    %1089 = vmatprep.subr.bf16.mxu0 %v867
    %1090 = vmatpush1.bf16.msra.mxu0 %v866
    %1091 = vmatprep.subr.bf16.mxu0 %v871
    %1092 = vmatpush1.bf16.msra.mxu0 %v870
    %1093 = vmatprep.subr.bf16.mxu0 %v875
    %1094 = vmatpush1.bf16.msra.mxu0 %v874
    %1095 = vmatprep.subr.bf16.mxu0 %v879
    %1096 = vmatpush1.bf16.msra.mxu0 %v878
    %1097 = vmatprep.subr.bf16.mxu0 %v883
    %1098 = vmatpush1.bf16.msra.mxu0 %v882
    %1099 = vmatprep.subr.bf16.mxu0 %v887
    %1100 = vmatpush1.bf16.msra.mxu0 %v886
    %1101 = vmatprep.subr.bf16.mxu0 %v891
    %1102 = vmatpush1.bf16.msra.mxu0 %v890
    %1103 = vmatprep.subr.bf16.mxu0 %v895
    %1104 = vmatpush1.bf16.msra.mxu0 %v894
    %1105 = vmatprep.subr.bf16.mxu0 %v899
    %1106 = vmatpush1.bf16.msra.mxu0 %v898
    %1107 = vmatprep.subr.bf16.mxu0 %v903
    %1108 = vmatpush1.bf16.msra.mxu0 %v902
    %1109 = vmatprep.mubr.bf16.mxu0 %v265
    %1110 = vmatmul.mubr.bf16.gmra.mrb[0].mxu0 %v264
    %v1111 = vpop.f32.mrb[0].mxu0
    %v1112 = vadd.f32 %v1069, %v1111
    %v1113 = vpop.f32.mrb[0].mxu0
    %v1114 = vadd.f32 %v1071, %v1113
    %v1115 = vpop.f32.mrb[0].mxu0
    %v1116 = vadd.f32 %v1073, %v1115
    %v1117 = vpop.f32.mrb[0].mxu0
    %v1118 = vadd.f32 %v1075, %v1117
    %1119 = vdwg.mxu0
    %1120 = vmatprep.subr.bf16.mxu0 %v781
    %1121 = vmatpush1.bf16.msra.mxu0 %v780
    %1122 = vmatprep.subr.bf16.mxu0 %v785
    %1123 = vmatpush1.bf16.msra.mxu0 %v784
    %1124 = vmatprep.subr.bf16.mxu0 %v789
    %1125 = vmatpush1.bf16.msra.mxu0 %v788
    %1126 = vmatprep.subr.bf16.mxu0 %v793
    %1127 = vmatpush1.bf16.msra.mxu0 %v792
    %1128 = vmatprep.subr.bf16.mxu0 %v797
    %1129 = vmatpush1.bf16.msra.mxu0 %v796
    %1130 = vmatprep.subr.bf16.mxu0 %v801
    %1131 = vmatpush1.bf16.msra.mxu0 %v800
    %1132 = vmatprep.subr.bf16.mxu0 %v805
    %1133 = vmatpush1.bf16.msra.mxu0 %v804
    %1134 = vmatprep.subr.bf16.mxu0 %v809
    %1135 = vmatpush1.bf16.msra.mxu0 %v808
    %1136 = vmatprep.subr.bf16.mxu0 %v813
    %1137 = vmatpush1.bf16.msra.mxu0 %v812
    %1138 = vmatprep.subr.bf16.mxu0 %v817
    %1139 = vmatpush1.bf16.msra.mxu0 %v816
    %1140 = vmatprep.subr.bf16.mxu0 %v821
    %1141 = vmatpush1.bf16.msra.mxu0 %v820
    %1142 = vmatprep.subr.bf16.mxu0 %v825
    %1143 = vmatpush1.bf16.msra.mxu0 %v824
    %1144 = vmatprep.subr.bf16.mxu0 %v829
    %1145 = vmatpush1.bf16.msra.mxu0 %v828
    %1146 = vmatprep.subr.bf16.mxu0 %v833
    %1147 = vmatpush1.bf16.msra.mxu0 %v832
    %1148 = vmatprep.subr.bf16.mxu0 %v837
    %1149 = vmatpush1.bf16.msra.mxu0 %v836
    %1150 = vmatprep.subr.bf16.mxu0 %v841
    %1151 = vmatpush1.bf16.msra.mxu0 %v840
    %1152 = vmatprep.mubr.bf16.mxu0 %v263
    %1153 = vmatmul.mubr.bf16.gmra.mrb[0].mxu0 %v262
    %v1154 = vpop.f32.mrb[0].mxu0
    %v1155 = vadd.f32 0.0, %v1154
    %v1156 = vpop.f32.mrb[0].mxu0
    %v1157 = vadd.f32 0.0, %v1156
    %v1158 = vpop.f32.mrb[0].mxu0
    %v1159 = vadd.f32 0.0, %v1158
    %v1160 = vpop.f32.mrb[0].mxu0
    %v1161 = vadd.f32 0.0, %v1160
    %1162 = vdwg.mxu0
    %1163 = vmatprep.subr.bf16.mxu0 %v845
    %1164 = vmatpush1.bf16.msra.mxu0 %v844
    %1165 = vmatprep.subr.bf16.mxu0 %v849
    %1166 = vmatpush1.bf16.msra.mxu0 %v848
    %1167 = vmatprep.subr.bf16.mxu0 %v853
    %1168 = vmatpush1.bf16.msra.mxu0 %v852
    %1169 = vmatprep.subr.bf16.mxu0 %v857
    %1170 = vmatpush1.bf16.msra.mxu0 %v856
    %1171 = vmatprep.subr.bf16.mxu0 %v861
    %1172 = vmatpush1.bf16.msra.mxu0 %v860
    %1173 = vmatprep.subr.bf16.mxu0 %v865
    %1174 = vmatpush1.bf16.msra.mxu0 %v864
    %1175 = vmatprep.subr.bf16.mxu0 %v869
    %1176 = vmatpush1.bf16.msra.mxu0 %v868
    %1177 = vmatprep.subr.bf16.mxu0 %v873
    %1178 = vmatpush1.bf16.msra.mxu0 %v872
    %1179 = vmatprep.subr.bf16.mxu0 %v877
    %1180 = vmatpush1.bf16.msra.mxu0 %v876
    %1181 = vmatprep.subr.bf16.mxu0 %v881
    %1182 = vmatpush1.bf16.msra.mxu0 %v880
    %1183 = vmatprep.subr.bf16.mxu0 %v885
    %1184 = vmatpush1.bf16.msra.mxu0 %v884
    %1185 = vmatprep.subr.bf16.mxu0 %v889
    %1186 = vmatpush1.bf16.msra.mxu0 %v888
    %1187 = vmatprep.subr.bf16.mxu0 %v893
    %1188 = vmatpush1.bf16.msra.mxu0 %v892
    %1189 = vmatprep.subr.bf16.mxu0 %v897
    %1190 = vmatpush1.bf16.msra.mxu0 %v896
    %1191 = vmatprep.subr.bf16.mxu0 %v901
    %1192 = vmatpush1.bf16.msra.mxu0 %v900
    %1193 = vmatprep.subr.bf16.mxu0 %v905
    %1194 = vmatpush1.bf16.msra.mxu0 %v904
    %1195 = vmatprep.mubr.bf16.mxu0 %v265
    %1196 = vmatmul.mubr.bf16.gmra.mrb[0].mxu0 %v264
    %v1197 = vpop.f32.mrb[0].mxu0
    %v1198 = vadd.f32 %v1155, %v1197
    %v1199 = vpop.f32.mrb[0].mxu0
    %v1200 = vadd.f32 %v1157, %v1199
    %v1201 = vpop.f32.mrb[0].mxu0
    %v1202 = vadd.f32 %v1159, %v1201
    %v1203 = vpop.f32.mrb[0].mxu0
    %v1204 = vadd.f32 %v1161, %v1203
    %1205 = vdwg.mxu0
    %v1206 = vpack.c.bf16 %v1116, %v1112
    %v1207 = vpack.c.bf16 %v1118, %v1114
    %v1208 = vpack.c.bf16 %v1202, %v1198
    %v1209 = vpack.c.bf16 %v1204, %v1200
    %v1210 = vld [vmem:[%s4] sm:$0xf]
    %v1213 = vunpack.c.l.s4 1966171168
    %v1214 = vunpack.c.0.s8 %v1213
    %v1215 = vlaneseq
    %v1216 = vshrl.u32 %v1215, 7
    %v1217 = vsub.s32 %v1214, %v1216
    %v1218 = vrot.slane %v1210, %v1217
    %v1219 = vcombine.high %v1218, %v1218
    %v1221 = vunpack.c.l.s4 1966171168
    %v1222 = vunpack.c.0.s8 %v1221
    %v1223 = vlaneseq
    %v1224 = vshrl.u32 %v1223, 7
    %v1225 = vsub.s32 %v1222, %v1224
    %v1226 = vrot.slane %v1218, %v1225
    %v1228 = vunpack.c.l.s4 1966171168
    %v1229 = vunpack.c.0.s8 %v1228
    %v1230 = vlaneseq
    %v1231 = vshrl.u32 %v1230, 7
    %v1232 = vsub.s32 %v1229, %v1231
    %v1233 = vrot.slane %v1219, %v1232
    %v1234 = vcombine.high %v1226, %v1226
    %v1235 = vcombine.high %v1233, %v1233
    %v1237 = vpack.i.b16 %v1226, %v1226
    %v1239 = vlaneseq
    %v1240 = vshrl.u32 %v1239, 7
    %v1241 = vsub.s32 0, %v1240
    %v1242 = vrot.slane %v1237, %v1241
    %v1244 = vpack.i.b16 %v1233, %v1233
    %v1246 = vlaneseq
    %v1247 = vshrl.u32 %v1246, 7
    %v1248 = vsub.s32 0, %v1247
    %v1249 = vrot.slane %v1244, %v1248
    %v1251 = vpack.i.b16 %v1234, %v1234
    %v1253 = vlaneseq
    %v1254 = vshrl.u32 %v1253, 7
    %v1255 = vsub.s32 0, %v1254
    %v1256 = vrot.slane %v1251, %v1255
    %v1258 = vpack.i.b16 %v1235, %v1235
    %v1260 = vlaneseq
    %v1261 = vshrl.u32 %v1260, 7
    %v1262 = vsub.s32 0, %v1261
    %v1263 = vrot.slane %v1258, %v1262
    %v1264 = vadd.bf16 %v1206, %v1242
    %v1265 = vadd.bf16 %v1207, %v1249
    %v1266 = vadd.bf16 %v1208, %v1256
    %v1267 = vadd.bf16 %v1209, %v1263
    %v1268 = vmax.bf16 %v1264, 0
    %v1269 = vmax.bf16 %v1265, 0
    %v1270 = vmax.bf16 %v1266, 0
    %v1271 = vmax.bf16 %v1267, 0
    %v1272 = vld [vmem:[#allocation8] sm:$0xf]
    %v1273 = vld [vmem:[#allocation8 + $0x4] sm:$0xf]
    %v1274 = vld [vmem:[#allocation8 + $0x8] sm:$0xf]
    %v1275 = vld [vmem:[#allocation8 + $0xc] sm:$0xf]
    %v1276 = vld [vmem:[#allocation8 + $0x10] sm:$0xf]
    %v1277 = vld [vmem:[#allocation8 + $0x14] sm:$0xf]
    %v1278 = vld [vmem:[#allocation8 + $0x18] sm:$0xf]
    %v1279 = vld [vmem:[#allocation8 + $0x1c] sm:$0xf]
    %v1280 = vld [vmem:[#allocation8 + $0x20] sm:$0xf]
    %v1281 = vld [vmem:[#allocation8 + $0x24] sm:$0xf]
    %v1282 = vld [vmem:[#allocation8 + $0x28] sm:$0xf]
    %v1283 = vld [vmem:[#allocation8 + $0x2c] sm:$0xf]
    %v1284 = vld [vmem:[#allocation8 + $0x30] sm:$0xf]
    %v1285 = vld [vmem:[#allocation8 + $0x34] sm:$0xf]
    %v1286 = vld [vmem:[#allocation8 + $0x38] sm:$0xf]
    %v1287 = vld [vmem:[#allocation8 + $0x3c] sm:$0xf]
    %v1288 = vld [vmem:[#allocation8 + $0x40] sm:$0xf]
    %v1289 = vld [vmem:[#allocation8 + $0x44] sm:$0xf]
    %v1290 = vld [vmem:[#allocation8 + $0x48] sm:$0xf]
    %v1291 = vld [vmem:[#allocation8 + $0x4c] sm:$0xf]
    %v1292 = vld [vmem:[#allocation8 + $0x50] sm:$0xf]
    %v1293 = vld [vmem:[#allocation8 + $0x54] sm:$0xf]
    %v1294 = vld [vmem:[#allocation8 + $0x58] sm:$0xf]
    %v1295 = vld [vmem:[#allocation8 + $0x5c] sm:$0xf]
    %v1296 = vld [vmem:[#allocation8 + $0x60] sm:$0xf]
    %v1297 = vld [vmem:[#allocation8 + $0x64] sm:$0xf]
    %v1298 = vld [vmem:[#allocation8 + $0x68] sm:$0xf]
    %v1299 = vld [vmem:[#allocation8 + $0x6c] sm:$0xf]
    %v1300 = vld [vmem:[#allocation8 + $0x70] sm:$0xf]
    %v1301 = vld [vmem:[#allocation8 + $0x74] sm:$0xf]
    %v1302 = vld [vmem:[#allocation8 + $0x78] sm:$0xf]
    %v1303 = vld [vmem:[#allocation8 + $0x7c] sm:$0xf]
    %v1304 = vld [vmem:[#allocation8 + $0x80] sm:$0xf]
    %v1305 = vld [vmem:[#allocation8 + $0x84] sm:$0xf]
    %v1306 = vld [vmem:[#allocation8 + $0x88] sm:$0xf]
    %v1307 = vld [vmem:[#allocation8 + $0x8c] sm:$0xf]
    %v1308 = vld [vmem:[#allocation8 + $0x90] sm:$0xf]
    %v1309 = vld [vmem:[#allocation8 + $0x94] sm:$0xf]
    %v1310 = vld [vmem:[#allocation8 + $0x98] sm:$0xf]
    %v1311 = vld [vmem:[#allocation8 + $0x9c] sm:$0xf]
    %v1312 = vld [vmem:[#allocation8 + $0xa0] sm:$0xf]
    %v1313 = vld [vmem:[#allocation8 + $0xa4] sm:$0xf]
    %v1314 = vld [vmem:[#allocation8 + $0xa8] sm:$0xf]
    %v1315 = vld [vmem:[#allocation8 + $0xac] sm:$0xf]
    %v1316 = vld [vmem:[#allocation8 + $0xb0] sm:$0xf]
    %v1317 = vld [vmem:[#allocation8 + $0xb4] sm:$0xf]
    %v1318 = vld [vmem:[#allocation8 + $0xb8] sm:$0xf]
    %v1319 = vld [vmem:[#allocation8 + $0xbc] sm:$0xf]
    %v1320 = vld [vmem:[#allocation8 + $0xc0] sm:$0xf]
    %v1321 = vld [vmem:[#allocation8 + $0xc4] sm:$0xf]
    %v1322 = vld [vmem:[#allocation8 + $0xc8] sm:$0xf]
    %v1323 = vld [vmem:[#allocation8 + $0xcc] sm:$0xf]
    %v1324 = vld [vmem:[#allocation8 + $0xd0] sm:$0xf]
    %v1325 = vld [vmem:[#allocation8 + $0xd4] sm:$0xf]
    %v1326 = vld [vmem:[#allocation8 + $0xd8] sm:$0xf]
    %v1327 = vld [vmem:[#allocation8 + $0xdc] sm:$0xf]
    %v1328 = vld [vmem:[#allocation8 + $0xe0] sm:$0xf]
    %v1329 = vld [vmem:[#allocation8 + $0xe4] sm:$0xf]
    %v1330 = vld [vmem:[#allocation8 + $0xe8] sm:$0xf]
    %v1331 = vld [vmem:[#allocation8 + $0xec] sm:$0xf]
    %v1332 = vld [vmem:[#allocation8 + $0xf0] sm:$0xf]
    %v1333 = vld [vmem:[#allocation8 + $0xf4] sm:$0xf]
    %v1334 = vld [vmem:[#allocation8 + $0xf8] sm:$0xf]
    %v1335 = vld [vmem:[#allocation8 + $0xfc] sm:$0xf]
    %v1336 = vld [vmem:[%s6] sm:$0x1]
    %v1338 = vlaneseq
    %v1339 = vshrl.u32 %v1338, 7
    %v1340 = vsub.s32 0, %v1339
    %v1341 = vrot.slane %v1336, %v1340
    %v1407 = vunpack.c.l.b16 %v1272
    %v1408 = vunpack.c.l.b16 %v1273
    %v1409 = vunpack.c.l.b16 %v1274
    %v1410 = vunpack.c.l.b16 %v1275
    %v1411 = vunpack.c.l.b16 %v1276
    %v1412 = vunpack.c.l.b16 %v1277
    %v1413 = vunpack.c.l.b16 %v1278
    %v1414 = vunpack.c.l.b16 %v1279
    %v1415 = vunpack.c.l.b16 %v1280
    %v1416 = vunpack.c.l.b16 %v1281
    %v1417 = vunpack.c.l.b16 %v1282
    %v1418 = vunpack.c.l.b16 %v1283
    %v1419 = vunpack.c.l.b16 %v1284
    %v1420 = vunpack.c.l.b16 %v1285
    %v1421 = vunpack.c.l.b16 %v1286
    %v1422 = vunpack.c.l.b16 %v1287
    %v1423 = vunpack.c.l.b16 %v1288
    %v1424 = vunpack.c.l.b16 %v1289
    %v1425 = vunpack.c.l.b16 %v1290
    %v1426 = vunpack.c.l.b16 %v1291
    %v1427 = vunpack.c.l.b16 %v1292
    %v1428 = vunpack.c.l.b16 %v1293
    %v1429 = vunpack.c.l.b16 %v1294
    %v1430 = vunpack.c.l.b16 %v1295
    %v1431 = vunpack.c.l.b16 %v1296
    %v1432 = vunpack.c.l.b16 %v1297
    %v1433 = vunpack.c.l.b16 %v1298
    %v1434 = vunpack.c.l.b16 %v1299
    %v1435 = vunpack.c.l.b16 %v1300
    %v1436 = vunpack.c.l.b16 %v1301
    %v1437 = vunpack.c.l.b16 %v1302
    %v1438 = vunpack.c.l.b16 %v1303
    %v1439 = vunpack.c.l.b16 %v1304
    %v1440 = vunpack.c.l.b16 %v1305
    %v1441 = vunpack.c.l.b16 %v1306
    %v1442 = vunpack.c.l.b16 %v1307
    %v1443 = vunpack.c.l.b16 %v1308
    %v1444 = vunpack.c.l.b16 %v1309
    %v1445 = vunpack.c.l.b16 %v1310
    %v1446 = vunpack.c.l.b16 %v1311
    %v1447 = vunpack.c.l.b16 %v1312
    %v1448 = vunpack.c.l.b16 %v1313
    %v1449 = vunpack.c.l.b16 %v1314
    %v1450 = vunpack.c.l.b16 %v1315
    %v1451 = vunpack.c.l.b16 %v1316
    %v1452 = vunpack.c.l.b16 %v1317
    %v1453 = vunpack.c.l.b16 %v1318
    %v1454 = vunpack.c.l.b16 %v1319
    %v1455 = vunpack.c.l.b16 %v1320
    %v1456 = vunpack.c.l.b16 %v1321
    %v1457 = vunpack.c.l.b16 %v1322
    %v1458 = vunpack.c.l.b16 %v1323
    %v1459 = vunpack.c.l.b16 %v1324
    %v1460 = vunpack.c.l.b16 %v1325
    %v1461 = vunpack.c.l.b16 %v1326
    %v1462 = vunpack.c.l.b16 %v1327
    %v1463 = vunpack.c.l.b16 %v1328
    %v1464 = vunpack.c.l.b16 %v1329
    %v1465 = vunpack.c.l.b16 %v1330
    %v1466 = vunpack.c.l.b16 %v1331
    %v1467 = vunpack.c.l.b16 %v1332
    %v1468 = vunpack.c.l.b16 %v1333
    %v1469 = vunpack.c.l.b16 %v1334
    %v1470 = vunpack.c.l.b16 %v1335
    %v1471 = vpack.c.b16 %v1408, %v1407
    %v1472 = vpack.c.b16 %v1410, %v1409
    %v1473 = vpack.c.b16 %v1412, %v1411
    %v1474 = vpack.c.b16 %v1414, %v1413
    %v1475 = vpack.c.b16 %v1416, %v1415
    %v1476 = vpack.c.b16 %v1418, %v1417
    %v1477 = vpack.c.b16 %v1420, %v1419
    %v1478 = vpack.c.b16 %v1422, %v1421
    %v1479 = vpack.c.b16 %v1424, %v1423
    %v1480 = vpack.c.b16 %v1426, %v1425
    %v1481 = vpack.c.b16 %v1428, %v1427
    %v1482 = vpack.c.b16 %v1430, %v1429
    %v1483 = vpack.c.b16 %v1432, %v1431
    %v1484 = vpack.c.b16 %v1434, %v1433
    %v1485 = vpack.c.b16 %v1436, %v1435
    %v1486 = vpack.c.b16 %v1438, %v1437
    %v1487 = vpack.c.b16 %v1440, %v1439
    %v1488 = vpack.c.b16 %v1442, %v1441
    %v1489 = vpack.c.b16 %v1444, %v1443
    %v1490 = vpack.c.b16 %v1446, %v1445
    %v1491 = vpack.c.b16 %v1448, %v1447
    %v1492 = vpack.c.b16 %v1450, %v1449
    %v1493 = vpack.c.b16 %v1452, %v1451
    %v1494 = vpack.c.b16 %v1454, %v1453
    %v1495 = vpack.c.b16 %v1456, %v1455
    %v1496 = vpack.c.b16 %v1458, %v1457
    %v1497 = vpack.c.b16 %v1460, %v1459
    %v1498 = vpack.c.b16 %v1462, %v1461
    %v1499 = vpack.c.b16 %v1464, %v1463
    %v1500 = vpack.c.b16 %v1466, %v1465
    %v1501 = vpack.c.b16 %v1468, %v1467
    %v1502 = vpack.c.b16 %v1470, %v1469
    %1535 = vmatprep.subr.bf16.mxu0 0
    %1536 = vmatpush1.bf16.msra.mxu0 %v1471
    %1537 = vmatprep.subr.bf16.mxu0 0
    %1538 = vmatpush1.bf16.msra.mxu0 %v1472
    %1539 = vmatprep.subr.bf16.mxu0 0
    %1540 = vmatpush1.bf16.msra.mxu0 %v1473
    %1541 = vmatprep.subr.bf16.mxu0 0
    %1542 = vmatpush1.bf16.msra.mxu0 %v1474
    %1543 = vmatprep.subr.bf16.mxu0 0
    %1544 = vmatpush1.bf16.msra.mxu0 %v1475
    %1545 = vmatprep.subr.bf16.mxu0 0
    %1546 = vmatpush1.bf16.msra.mxu0 %v1476
    %1547 = vmatprep.subr.bf16.mxu0 0
    %1548 = vmatpush1.bf16.msra.mxu0 %v1477
    %1549 = vmatprep.subr.bf16.mxu0 0
    %1550 = vmatpush1.bf16.msra.mxu0 %v1478
    %1551 = vmatprep.subr.bf16.mxu0 0
    %1552 = vmatpush1.bf16.msra.mxu0 %v1479
    %1553 = vmatprep.subr.bf16.mxu0 0
    %1554 = vmatpush1.bf16.msra.mxu0 %v1480
    %1555 = vmatprep.subr.bf16.mxu0 0
    %1556 = vmatpush1.bf16.msra.mxu0 %v1481
    %1557 = vmatprep.subr.bf16.mxu0 0
    %1558 = vmatpush1.bf16.msra.mxu0 %v1482
    %1559 = vmatprep.subr.bf16.mxu0 0
    %1560 = vmatpush1.bf16.msra.mxu0 %v1483
    %1561 = vmatprep.subr.bf16.mxu0 0
    %1562 = vmatpush1.bf16.msra.mxu0 %v1484
    %1563 = vmatprep.subr.bf16.mxu0 0
    %1564 = vmatpush1.bf16.msra.mxu0 %v1485
    %1565 = vmatprep.subr.bf16.mxu0 0
    %1566 = vmatpush1.bf16.msra.mxu0 %v1486
    %1567 = vmatprep.mubr.bf16.mxu0 %v1269
    %1568 = vmatmul.mubr.bf16.gmra.mrb[0].mxu0 %v1268
    %v1569 = vpop.f32.mrb[0].mxu0
    %v1570 = vadd.f32 %v1341, %v1569
    %v1571 = vpop.f32.mrb[0].mxu0
    %v1572 = vpop.f32.mrb[0].mxu0
    %v1573 = vadd.f32 %v1341, %v1572
    %v1574 = vpop.f32.mrb[0].mxu0
    %1575 = vdwg.mxu0
    %1576 = vmatprep.subr.bf16.mxu0 0
    %1577 = vmatpush1.bf16.msra.mxu0 %v1487
    %1578 = vmatprep.subr.bf16.mxu0 0
    %1579 = vmatpush1.bf16.msra.mxu0 %v1488
    %1580 = vmatprep.subr.bf16.mxu0 0
    %1581 = vmatpush1.bf16.msra.mxu0 %v1489
    %1582 = vmatprep.subr.bf16.mxu0 0
    %1583 = vmatpush1.bf16.msra.mxu0 %v1490
    %1584 = vmatprep.subr.bf16.mxu0 0
    %1585 = vmatpush1.bf16.msra.mxu0 %v1491
    %1586 = vmatprep.subr.bf16.mxu0 0
    %1587 = vmatpush1.bf16.msra.mxu0 %v1492
    %1588 = vmatprep.subr.bf16.mxu0 0
    %1589 = vmatpush1.bf16.msra.mxu0 %v1493
    %1590 = vmatprep.subr.bf16.mxu0 0
    %1591 = vmatpush1.bf16.msra.mxu0 %v1494
    %1592 = vmatprep.subr.bf16.mxu0 0
    %1593 = vmatpush1.bf16.msra.mxu0 %v1495
    %1594 = vmatprep.subr.bf16.mxu0 0
    %1595 = vmatpush1.bf16.msra.mxu0 %v1496
    %1596 = vmatprep.subr.bf16.mxu0 0
    %1597 = vmatpush1.bf16.msra.mxu0 %v1497
    %1598 = vmatprep.subr.bf16.mxu0 0
    %1599 = vmatpush1.bf16.msra.mxu0 %v1498
    %1600 = vmatprep.subr.bf16.mxu0 0
    %1601 = vmatpush1.bf16.msra.mxu0 %v1499
    %1602 = vmatprep.subr.bf16.mxu0 0
    %1603 = vmatpush1.bf16.msra.mxu0 %v1500
    %1604 = vmatprep.subr.bf16.mxu0 0
    %1605 = vmatpush1.bf16.msra.mxu0 %v1501
    %1606 = vmatprep.subr.bf16.mxu0 0
    %1607 = vmatpush1.bf16.msra.mxu0 %v1502
    %1608 = vmatprep.mubr.bf16.mxu0 %v1271
    %1609 = vmatmul.mubr.bf16.gmra.mrb[0].mxu0 %v1270
    %v1610 = vpop.f32.mrb[0].mxu0
    %v1611 = vadd.f32 %v1570, %v1610
    %v1612 = vpop.f32.mrb[0].mxu0
    %v1613 = vpop.f32.mrb[0].mxu0
    %v1614 = vadd.f32 %v1573, %v1613
    %v1615 = vpop.f32.mrb[0].mxu0
    %1616 = vdwg.mxu0
    %1617 = vst [vmem:[#allocation10] sm:$0xff] %v1611
    %1618 = vst [vmem:[#allocation10 + $0x8] sm:$0xff] %v1614
    // Predicated region
    $region46: #{tpu_custom_call.1} parent=1 // pred_check
      _
    $region47: #{tpu_custom_call.1} parent=1 // pred_check_branch
      %1620 = sbr.rel (0) target = $region49
    $region48: #{tpu_custom_call.1} parent=1 // pred_region
      %s1622 = ssub.s32 256, 256
      %1623 = vsyncadd [#allocation4], %s1622
      %s1624 = sshll.u32 [#allocation10], 4
      %s1625 = int_to_ptr.vmem [resolvable:$true] %s1624
      %1630 = dma.vmem_to_hbm [thread:$0]  %s1625, 256, %s7, [#allocation4], 128, 128, 8
    $region49: #{tpu_custom_call.1} parent=1 // pred_fallthru
      _
    // Predicated region
    $region50: #{tpu_custom_call.1} parent=1 // pred_check
      _
    $region51: #{tpu_custom_call.1} parent=1 // pred_check_branch
      %1632 = sbr.rel (0) target = $region53
    $region52: #{tpu_custom_call.1} parent=1 // pred_region
      %1633 = dma.done [#allocation4], 256
    $region53: #{tpu_custom_call.1} parent=1 // pred_fallthru
      _
    %1634 = vsyncpa [#allocation3], 1
    %1635 = vsyncpa [#allocation6], 1
    %1636 = vsyncpa [#allocation9], 1
    %1637 = vsyncpa [#allocation4], 1

</llo_original>
